<compile_context>
chip_gen: v7x
topology: tpu7x:2x2x1
jax: 0.10.0
libtpu: 0.0.40
codegen_flags: <defaults>
</compile_context>

<pallas_src>
import functools

import jax
import jax.numpy as jnp
from jax.experimental import pallas as pl
from jax.experimental.pallas import tpu as pltpu


def _round_up(x, m):
    return ((x + m - 1) // m) * m


def _disc_kernel(x_ref, w1_ref, b1_ref, w2_ref, b2_ref, w3_ref, b3_ref, o_ref):
    # Feature-major: x tile (7, TILE_B) bf16; activations (128, TILE_B) f32.
    x = x_ref[...]                                                       # (7, TB) bf16

    # Linear(7 -> 128) + LeakyReLU(0.2).  bf16 MXU operands, f32 accumulation.
    h1 = jnp.dot(w1_ref[...], x, preferred_element_type=jnp.float32)    # (128, TB)
    h1 = h1 + b1_ref[...]
    h1 = jnp.where(h1 >= 0.0, h1, 0.2 * h1)

    # Linear(128 -> 128) + LeakyReLU(0.2).
    h2 = jnp.dot(w2_ref[...], h1.astype(jnp.bfloat16),
                 preferred_element_type=jnp.float32)                    # (128, TB)
    h2 = h2 + b2_ref[...]
    h2 = jnp.where(h2 >= 0.0, h2, 0.2 * h2)

    # Dropout(0.3): identity in eval mode.
    # TODO(synk): training-mode dropout (pltpu.prng_seed/prng_random_bits mask
    # + 1/0.7 scale) omitted; this kernel matches Discriminator.eval().

    # Linear(128 -> 1): N=1 would use 1/128 of the MXU output lanes, so do it
    # on the VPU (multiply) + XLU (sublane reduce) -> effectively free here.
    logits = jnp.sum(h2 * w3_ref[...], axis=0, keepdims=True) + b3_ref[0]  # (1, TB)

    # Sigmoid: exp and reciprocal both land on the EUP slot.
    o_ref[...] = pl.reciprocal(1.0 + jnp.exp(-logits), approx=True).astype(o_ref.dtype)


@functools.partial(jax.jit, static_argnames=("tile_b",))
def discriminator_forward(x, params, tile_b=1024):
    """x: (B, 7) float32.  Returns (B, 1) float32 sigmoid scores."""
    B, F = x.shape
    tile_b = max(256, min(tile_b, _round_up(B, 256)))     # multiple of 256 (MXU M)
    b_pad = _round_up(B, tile_b)
    nb = b_pad // tile_b

    # Feature-major, bf16 input: batch on the lane axis; pad batch to the grid.
    x_t = jnp.transpose(x).astype(jnp.bfloat16)           # (F, B)
    if b_pad != B:
        x_t = jnp.pad(x_t, ((0, 0), (0, b_pad - B)))

    const = lambda i: (0, 0)
    out_t = pl.pallas_call(
        _disc_kernel,
        out_shape=jax.ShapeDtypeStruct((1, b_pad), jnp.float32),
        grid=(nb,),
        in_specs=[
            pl.BlockSpec((F, tile_b), lambda i: (0, i)),            # x (feature-major)
            pl.BlockSpec((128, F), const),                          # w1 (resident)
            pl.BlockSpec((128, 1), const),                          # b1
            pl.BlockSpec((128, 128), const),                        # w2
            pl.BlockSpec((128, 1), const),                          # b2
            pl.BlockSpec((128, 1), const),                          # w3 (VPU path)
            pl.BlockSpec(memory_space=pltpu.MemorySpace.SMEM),      # b3 scalar
        ],
        out_specs=pl.BlockSpec((1, tile_b), lambda i: (0, i)),      # lane-dense out
        compiler_params=pltpu.CompilerParams(
            dimension_semantics=("parallel",),     # megacore split on v7x
            vmem_limit_bytes=32 * 1024 * 1024,
        ),
    )(x_t, params["w1"], params["b1"], params["w2"], params["b2"],
      params["w3"], params["b3"])

    return jnp.transpose(out_t[:, :B])                     # (B, 1)


def init_params(key, input_size=7):
    """PyTorch nn.Linear default init U(-1/sqrt(fan_in), +1/sqrt(fan_in)),
    stored in the kernel's layout: W is (out, in); biases are column vectors."""
    def linear(key, fan_in, fan_out):
        kw, kb = jax.random.split(key)
        bound = 1.0 / float(fan_in) ** 0.5
        w = jax.random.uniform(kw, (fan_out, fan_in), jnp.float32, -bound, bound)
        b = jax.random.uniform(kb, (fan_out, 1), jnp.float32, -bound, bound)
        return w, b

    k1, k2, k3 = jax.random.split(key, 3)
    w1, b1 = linear(k1, input_size, 128)
    w2, b2 = linear(k2, 128, 128)
    w3, b3 = linear(k3, 128, 1)
    return dict(
        w1=w1.astype(jnp.bfloat16), b1=b1,          # (128, 7) bf16, (128, 1) f32
        w2=w2.astype(jnp.bfloat16), b2=b2,          # (128, 128) bf16, (128, 1) f32
        w3=jnp.transpose(w3),                       # (128, 1) f32 (VPU final layer)
        b3=jnp.reshape(b3, (1,)),                   # (1,) f32 scalar in SMEM
    )


def reference_forward(x, p):
    """Pure-JAX reference mirroring the kernel's dtype policy
    (bf16 matmul inputs, f32 accumulation / activation math)."""
    xb = x.astype(jnp.bfloat16).astype(jnp.float32)
    w1 = p["w1"].astype(jnp.float32)               # (128, 7)
    w2 = p["w2"].astype(jnp.float32)               # (128, 128)
    h1 = xb @ w1.T + p["b1"].T                     # (B, 128)
    h1 = jnp.where(h1 >= 0.0, h1, 0.2 * h1)
    h1 = h1.astype(jnp.bfloat16).astype(jnp.float32)
    h2 = h1 @ w2.T + p["b2"].T                     # (B, 128)
    h2 = jnp.where(h2 >= 0.0, h2, 0.2 * h2)
    logits = h2 @ p["w3"] + p["b3"]                # (B, 1)
    return jax.nn.sigmoid(logits)


if __name__ == "__main__":
    key = jax.random.PRNGKey(0)
    k_params, k_x1, k_x2 = jax.random.split(key, 3)

    input_size = 7
    params = init_params(k_params, input_size=input_size)

    # Small demo batch (one tile after padding to 256).
    x1 = jax.random.normal(k_x1, (8, input_size), jnp.float32)
    out1 = jax.block_until_ready(discriminator_forward(x1, params))
    ref1 = reference_forward(x1, params)
    assert out1.shape == (8, 1), out1.shape
    assert jnp.allclose(out1, ref1, atol=1e-2, rtol=1e-2), (out1, ref1)

    # Non-multiple batch exercising the multi-tile grid + padding path.
    x2 = jax.random.normal(k_x2, (300, input_size), jnp.float32)
    out2 = jax.block_until_ready(discriminator_forward(x2, params, tile_b=256))
    ref2 = reference_forward(x2, params)
    assert out2.shape == (300, 1), out2.shape
    assert jnp.allclose(out2, ref2, atol=1e-2, rtol=1e-2), float(
        jnp.max(jnp.abs(out2 - ref2)))

    print("KERNEL_OK")
</pallas_src>

<mosaic_0001>
module attributes {stable_mosaic.version = 11 : i64} {
  func.func @_disc_kernel(%arg0: i32, %arg1: memref<7x256xbf16, #tpu.memory_space<vmem>>, %arg2: memref<128x7xbf16, #tpu.memory_space<vmem>>, %arg3: memref<128x1xf32, #tpu.memory_space<vmem>>, %arg4: memref<128x128xbf16, #tpu.memory_space<vmem>>, %arg5: memref<128x1xf32, #tpu.memory_space<vmem>>, %arg6: memref<128x1xf32, #tpu.memory_space<vmem>>, %arg7: memref<1xf32, #tpu.memory_space<smem>>, %arg8: memref<1x256xf32, #tpu.memory_space<vmem>>) attributes {dimension_semantics = [#tpu.dimension_semantics<parallel>], iteration_bounds = array<i64: 1>, scalar_prefetch = 0 : i64, scratch_operands = 0 : i64, tpu.core_type = #tpu.core_type<tc>, window_params = [{transform_indices = @transform_0, window_bounds = array<i64: 7, 256>}, {pipeline_mode = #tpu.pipeline_mode<synchronous>, transform_indices = @transform_1, window_bounds = array<i64: 128, 7>}, {pipeline_mode = #tpu.pipeline_mode<synchronous>, transform_indices = @transform_2, window_bounds = array<i64: 128, 1>}, {pipeline_mode = #tpu.pipeline_mode<synchronous>, transform_indices = @transform_3, window_bounds = array<i64: 128, 128>}, {pipeline_mode = #tpu.pipeline_mode<synchronous>, transform_indices = @transform_4, window_bounds = array<i64: 128, 1>}, {pipeline_mode = #tpu.pipeline_mode<synchronous>, transform_indices = @transform_5, window_bounds = array<i64: 128, 1>}, {transform_indices = @transform_6, window_bounds = array<i64: 1>}, {transform_indices = @transform_7, window_bounds = array<i64: 1, 256>}]} {
    %c0 = arith.constant 0 : index
    %c0_0 = arith.constant 0 : index
    %0 = vector.load %arg1[%c0, %c0_0] : memref<7x256xbf16, #tpu.memory_space<vmem>>, vector<7x256xbf16>
    %c0_1 = arith.constant 0 : index
    %c0_2 = arith.constant 0 : index
    %1 = vector.load %arg2[%c0_1, %c0_2] : memref<128x7xbf16, #tpu.memory_space<vmem>>, vector<128x7xbf16>
    %cst = arith.constant dense<0.000000e+00> : vector<128x256xf32>
    %2 = tpu.matmul %1, %0, %cst {dimension_numbers = #tpu.dot_dimension_numbers<[1], [0], [0], [1], [0, 0, 1, 1], [], []>} : vector<128x7xbf16>, vector<7x256xbf16>, vector<128x256xf32> -> vector<128x256xf32>
    %c0_3 = arith.constant 0 : index
    %c0_4 = arith.constant 0 : index
    %3 = vector.load %arg3[%c0_3, %c0_4] : memref<128x1xf32, #tpu.memory_space<vmem>>, vector<128x1xf32>
    %4 = vector.broadcast %3 : vector<128x1xf32> to vector<128x256xf32>
    %5 = arith.addf %2, %4 : vector<128x256xf32>
    %cst_5 = arith.constant 0.000000e+00 : f32
    %6 = vector.broadcast %cst_5 : f32 to vector<128x256xf32>
    %7 = arith.cmpf oge, %5, %6 : vector<128x256xf32>
    %cst_6 = arith.constant 2.000000e-01 : f32
    %8 = vector.broadcast %cst_6 : f32 to vector<128x256xf32>
    %9 = arith.mulf %8, %5 : vector<128x256xf32>
    %10 = arith.select %7, %5, %9 : vector<128x256xi1>, vector<128x256xf32>
    %c0_7 = arith.constant 0 : index
    %c0_8 = arith.constant 0 : index
    %11 = vector.load %arg4[%c0_7, %c0_8] : memref<128x128xbf16, #tpu.memory_space<vmem>>, vector<128x128xbf16>
    %12 = arith.truncf %10 : vector<128x256xf32> to vector<128x256xbf16>
    %cst_9 = arith.constant dense<0.000000e+00> : vector<128x256xf32>
    %13 = tpu.matmul %11, %12, %cst_9 {dimension_numbers = #tpu.dot_dimension_numbers<[1], [0], [0], [1], [0, 0, 1, 1], [], []>} : vector<128x128xbf16>, vector<128x256xbf16>, vector<128x256xf32> -> vector<128x256xf32>
    %c0_10 = arith.constant 0 : index
    %c0_11 = arith.constant 0 : index
    %14 = vector.load %arg5[%c0_10, %c0_11] : memref<128x1xf32, #tpu.memory_space<vmem>>, vector<128x1xf32>
    %15 = vector.broadcast %14 : vector<128x1xf32> to vector<128x256xf32>
    %16 = arith.addf %13, %15 : vector<128x256xf32>
    %cst_12 = arith.constant 0.000000e+00 : f32
    %17 = vector.broadcast %cst_12 : f32 to vector<128x256xf32>
    %18 = arith.cmpf oge, %16, %17 : vector<128x256xf32>
    %cst_13 = arith.constant 2.000000e-01 : f32
    %19 = vector.broadcast %cst_13 : f32 to vector<128x256xf32>
    %20 = arith.mulf %19, %16 : vector<128x256xf32>
    %21 = arith.select %18, %16, %20 : vector<128x256xi1>, vector<128x256xf32>
    %c0_14 = arith.constant 0 : index
    %c0_15 = arith.constant 0 : index
    %22 = vector.load %arg6[%c0_14, %c0_15] : memref<128x1xf32, #tpu.memory_space<vmem>>, vector<128x1xf32>
    %23 = vector.broadcast %22 : vector<128x1xf32> to vector<128x256xf32>
    %24 = arith.mulf %21, %23 : vector<128x256xf32>
    %cst_16 = arith.constant dense<0.000000e+00> : vector<256xf32>
    %25 = vector.multi_reduction <add>, %24, %cst_16 [0] : vector<128x256xf32> to vector<256xf32>
    %26 = vector.shape_cast %25 : vector<256xf32> to vector<1x256xf32>
    %c0_17 = arith.constant 0 : index
    %27 = memref.load %arg7[%c0_17] : memref<1xf32, #tpu.memory_space<smem>>
    %28 = vector.broadcast %27 : f32 to vector<1x256xf32>
    %29 = arith.addf %26, %28 : vector<1x256xf32>
    %cst_18 = arith.constant 0.000000e+00 : f32
    %30 = vector.broadcast %cst_18 : f32 to vector<1x256xf32>
    %31 = arith.subf %30, %29 : vector<1x256xf32>
    %32 = math.exp %31 : vector<1x256xf32>
    %cst_19 = arith.constant 1.000000e+00 : f32
    %33 = vector.broadcast %cst_19 : f32 to vector<1x256xf32>
    %34 = arith.addf %33, %32 : vector<1x256xf32>
    %35 = tpu.reciprocal %34 {approx = true} : vector<1x256xf32> -> vector<1x256xf32>
    %c0_20 = arith.constant 0 : index
    %c0_21 = arith.constant 0 : index
    %36 = vector.load %arg8[%c0_20, %c0_21] : memref<1x256xf32, #tpu.memory_space<vmem>>, vector<1x256xf32>
    tpu.vector_store %arg8[%c0_20, %c0_21], %35 {strides = array<i32>} : memref<1x256xf32, #tpu.memory_space<vmem>>, vector<1x256xf32>,
    return
  }
  func.func @transform_0(%arg0: i32) -> (i32, i32) {
    %c0_i32 = arith.constant 0 : i32
    %c0_i32_0 = arith.constant 0 : i32
    return %c0_i32, %arg0 : i32, i32
  }
  func.func @transform_1(%arg0: i32) -> (i32, i32) {
    %c0_i32 = arith.constant 0 : i32
    %c0_i32_0 = arith.constant 0 : i32
    %c0_i32_1 = arith.constant 0 : i32
    return %c0_i32, %c0_i32_0 : i32, i32
  }
  func.func @transform_2(%arg0: i32) -> (i32, i32) {
    %c0_i32 = arith.constant 0 : i32
    %c0_i32_0 = arith.constant 0 : i32
    %c0_i32_1 = arith.constant 0 : i32
    return %c0_i32, %c0_i32_0 : i32, i32
  }
  func.func @transform_3(%arg0: i32) -> (i32, i32) {
    %c0_i32 = arith.constant 0 : i32
    %c0_i32_0 = arith.constant 0 : i32
    %c0_i32_1 = arith.constant 0 : i32
    return %c0_i32, %c0_i32_0 : i32, i32
  }
  func.func @transform_4(%arg0: i32) -> (i32, i32) {
    %c0_i32 = arith.constant 0 : i32
    %c0_i32_0 = arith.constant 0 : i32
    %c0_i32_1 = arith.constant 0 : i32
    return %c0_i32, %c0_i32_0 : i32, i32
  }
  func.func @transform_5(%arg0: i32) -> (i32, i32) {
    %c0_i32 = arith.constant 0 : i32
    %c0_i32_0 = arith.constant 0 : i32
    %c0_i32_1 = arith.constant 0 : i32
    return %c0_i32, %c0_i32_0 : i32, i32
  }
  func.func @transform_6(%arg0: i32) -> i32 {
    %c0_i32 = arith.constant 0 : i32
    %c0_i32_0 = arith.constant 0 : i32
    return %c0_i32 : i32
  }
  func.func @transform_7(%arg0: i32) -> (i32, i32) {
    %c0_i32 = arith.constant 0 : i32
    %c0_i32_0 = arith.constant 0 : i32
    return %c0_i32, %arg0 : i32, i32
  }
}

</mosaic_0001>

<llo_original>
// kernel: discriminator_forward.1
$region0: #{discriminator_forward.1}
  #allocation0 [shape = 'u32[]', space=smem, size = 0x4, offset = 0x4, fixed_abs, tag = 'smem constant byte address 0x4 - core index']
  #allocation1 [shape = 'u32[144,128]{1,0:T(1,128)}', space=vmem, size = 0x12000, scoped, tag = 'internal scratch']
  #allocation2 [shape = 'f32[1]{0:T(128)S(6)}', space=smem, size = 0x200, scoped, tag = 'scoped memory for discriminator_forward.1']
  %s0 = inlined_call_operand.vmem [shape: bf16[7,256], index: 0, kind: input, shape index: {}]
  %s1 = inlined_call_operand.vmem [shape: bf16[128,7], index: 1, kind: input, shape index: {}]
  %s2 = inlined_call_operand.vmem [shape: f32[128,1], index: 2, kind: input, shape index: {}]
  %s3 = inlined_call_operand.vmem [shape: bf16[128,128], index: 3, kind: input, shape index: {}]
  %s4 = inlined_call_operand.vmem [shape: f32[128,1], index: 4, kind: input, shape index: {}]
  %s5 = inlined_call_operand.vmem [shape: f32[128,1], index: 5, kind: input, shape index: {}]
  %s6 = inlined_call_operand.<no memory space> [shape: f32[1], index: 6, kind: input, shape index: {}]
  %s7 = inlined_call_operand.vmem [shape: f32[1,256], index: 7, kind: output, shape index: {}]
  %s8 = sld [smem:[#allocation0]]
  $region38: #{discriminator_forward.1} parent=0
    _
  %s10 = ssub.s32 1, %s8
  %s11 = scalar_select 0, %s10, %s8
  %12 = sst [smem:[#allocation2]] %s6
  // Predicated region
  $region2: #{discriminator_forward.1} parent=0 // pred_check
    _
  $region3: #{discriminator_forward.1} parent=0 // pred_check_branch
    %14 = sbr.rel (0) target = $region5
  $region4: #{discriminator_forward.1} parent=0 // pred_region
    _
  $region5: #{discriminator_forward.1} parent=0 // pred_fallthru
    _
  // Predicated region
  $region6: #{discriminator_forward.1} parent=0 // pred_check
    _
  $region7: #{discriminator_forward.1} parent=0 // pred_check_branch
    %16 = sbr.rel (0) target = $region9
  $region8: #{discriminator_forward.1} parent=0 // pred_region
    _
  $region9: #{discriminator_forward.1} parent=0 // pred_fallthru
    _
  // Predicated region
  $region10: #{discriminator_forward.1} parent=0 // pred_check
    _
  $region11: #{discriminator_forward.1} parent=0 // pred_check_branch
    %18 = sbr.rel (0) target = $region13
  $region12: #{discriminator_forward.1} parent=0 // pred_region
    _
  $region13: #{discriminator_forward.1} parent=0 // pred_fallthru
    _
  // Predicated region
  $region14: #{discriminator_forward.1} parent=0 // pred_check
    _
  $region15: #{discriminator_forward.1} parent=0 // pred_check_branch
    %20 = sbr.rel (0) target = $region17
  $region16: #{discriminator_forward.1} parent=0 // pred_region
    _
  $region17: #{discriminator_forward.1} parent=0 // pred_fallthru
    _
  // Predicated region
  $region18: #{discriminator_forward.1} parent=0 // pred_check
    _
  $region19: #{discriminator_forward.1} parent=0 // pred_check_branch
    %22 = sbr.rel (0) target = $region21
  $region20: #{discriminator_forward.1} parent=0 // pred_region
    _
  $region21: #{discriminator_forward.1} parent=0 // pred_fallthru
    _
  // Predicated region
  $region22: #{discriminator_forward.1} parent=0 // pred_check
    _
  $region23: #{discriminator_forward.1} parent=0 // pred_check_branch
    %24 = sbr.rel (0) target = $region25
  $region24: #{discriminator_forward.1} parent=0 // pred_region
    _
  $region25: #{discriminator_forward.1} parent=0 // pred_fallthru
    _
  // Predicated region
  $region26: #{discriminator_forward.1} parent=0 // pred_check
    _
  $region27: #{discriminator_forward.1} parent=0 // pred_check_branch
    %26 = sbr.rel (0) target = $region29
  $region28: #{discriminator_forward.1} parent=0 // pred_region
    _
  $region29: #{discriminator_forward.1} parent=0 // pred_fallthru
    _
  %v28 = vld [vmem:[%s0] sm:$0xff]
  %v29 = vld [vmem:[%s1] sm:$0xf]
  %v30 = vld [vmem:[%s1 + $0x4] sm:$0xf]
  %v31 = vld [vmem:[%s1 + $0x8] sm:$0xf]
  %v32 = vld [vmem:[%s1 + $0xc] sm:$0xf]
  %v33 = vld [vmem:[%s1 + $0x10] sm:$0xf]
  %v34 = vld [vmem:[%s1 + $0x14] sm:$0xf]
  %v35 = vld [vmem:[%s1 + $0x18] sm:$0xf]
  %v36 = vld [vmem:[%s1 + $0x1c] sm:$0xf]
  %v37 = vld [vmem:[%s1 + $0x20] sm:$0xf]
  %v38 = vld [vmem:[%s1 + $0x24] sm:$0xf]
  %v39 = vld [vmem:[%s1 + $0x28] sm:$0xf]
  %v40 = vld [vmem:[%s1 + $0x2c] sm:$0xf]
  %v41 = vld [vmem:[%s1 + $0x30] sm:$0xf]
  %v42 = vld [vmem:[%s1 + $0x34] sm:$0xf]
  %v43 = vld [vmem:[%s1 + $0x38] sm:$0xf]
  %v44 = vld [vmem:[%s1 + $0x3c] sm:$0xf]
  %v45 = vld [vmem:[%s2] sm:$0xff]
  %v46 = vld [vmem:[%s2 + $0x8] sm:$0xff]
  %v47 = vld [vmem:[%s2 + $0x10] sm:$0xff]
  %v48 = vld [vmem:[%s2 + $0x18] sm:$0xff]
  %v49 = vld [vmem:[%s2 + $0x20] sm:$0xff]
  %v50 = vld [vmem:[%s2 + $0x28] sm:$0xff]
  %v51 = vld [vmem:[%s2 + $0x30] sm:$0xff]
  %v52 = vld [vmem:[%s2 + $0x38] sm:$0xff]
  %v53 = vld [vmem:[%s2 + $0x40] sm:$0xff]
  %v54 = vld [vmem:[%s2 + $0x48] sm:$0xff]
  %v55 = vld [vmem:[%s2 + $0x50] sm:$0xff]
  %v56 = vld [vmem:[%s2 + $0x58] sm:$0xff]
  %v57 = vld [vmem:[%s2 + $0x60] sm:$0xff]
  %v58 = vld [vmem:[%s2 + $0x68] sm:$0xff]
  %v59 = vld [vmem:[%s2 + $0x70] sm:$0xff]
  %v60 = vld [vmem:[%s2 + $0x78] sm:$0xff]
  %62 = vset.pattern.permute.xlu0 0
  %63 = vperm.xlu0 %62, %v45
  %v64 = vpop.permute.xlu0 %63
  %67 = vset.pattern.permute.xlu0 0
  %68 = vperm.xlu0 %67, %v46
  %v69 = vpop.permute.xlu0 %68
  %72 = vset.pattern.permute.xlu0 0
  %73 = vperm.xlu0 %72, %v47
  %v74 = vpop.permute.xlu0 %73
  %77 = vset.pattern.permute.xlu0 0
  %78 = vperm.xlu0 %77, %v48
  %v79 = vpop.permute.xlu0 %78
  %82 = vset.pattern.permute.xlu0 0
  %83 = vperm.xlu0 %82, %v49
  %v84 = vpop.permute.xlu0 %83
  %87 = vset.pattern.permute.xlu0 0
  %88 = vperm.xlu0 %87, %v50
  %v89 = vpop.permute.xlu0 %88
  %92 = vset.pattern.permute.xlu0 0
  %93 = vperm.xlu0 %92, %v51
  %v94 = vpop.permute.xlu0 %93
  %97 = vset.pattern.permute.xlu0 0
  %98 = vperm.xlu0 %97, %v52
  %v99 = vpop.permute.xlu0 %98
  %102 = vset.pattern.permute.xlu0 0
  %103 = vperm.xlu0 %102, %v53
  %v104 = vpop.permute.xlu0 %103
  %107 = vset.pattern.permute.xlu0 0
  %108 = vperm.xlu0 %107, %v54
  %v109 = vpop.permute.xlu0 %108
  %112 = vset.pattern.permute.xlu0 0
  %113 = vperm.xlu0 %112, %v55
  %v114 = vpop.permute.xlu0 %113
  %117 = vset.pattern.permute.xlu0 0
  %118 = vperm.xlu0 %117, %v56
  %v119 = vpop.permute.xlu0 %118
  %122 = vset.pattern.permute.xlu0 0
  %123 = vperm.xlu0 %122, %v57
  %v124 = vpop.permute.xlu0 %123
  %127 = vset.pattern.permute.xlu0 0
  %128 = vperm.xlu0 %127, %v58
  %v129 = vpop.permute.xlu0 %128
  %132 = vset.pattern.permute.xlu0 0
  %133 = vperm.xlu0 %132, %v59
  %v134 = vpop.permute.xlu0 %133
  %137 = vset.pattern.permute.xlu0 0
  %138 = vperm.xlu0 %137, %v60
  %v139 = vpop.permute.xlu0 %138
  %v157 = vunpack.c.l.b16 %v29
  %v158 = vunpack.c.l.b16 %v30
  %v159 = vunpack.c.l.b16 %v31
  %v160 = vunpack.c.l.b16 %v32
  %v161 = vunpack.c.l.b16 %v33
  %v162 = vunpack.c.l.b16 %v34
  %v163 = vunpack.c.l.b16 %v35
  %v164 = vunpack.c.l.b16 %v36
  %v165 = vunpack.c.l.b16 %v37
  %v166 = vunpack.c.l.b16 %v38
  %v167 = vunpack.c.l.b16 %v39
  %v168 = vunpack.c.l.b16 %v40
  %v169 = vunpack.c.l.b16 %v41
  %v170 = vunpack.c.l.b16 %v42
  %v171 = vunpack.c.l.b16 %v43
  %v172 = vunpack.c.l.b16 %v44
  %v173 = vpack.c.b16 %v158, %v157
  %v174 = vpack.c.b16 %v160, %v159
  %v175 = vpack.c.b16 %v162, %v161
  %v176 = vpack.c.b16 %v164, %v163
  %v177 = vpack.c.b16 %v166, %v165
  %v178 = vpack.c.b16 %v168, %v167
  %v179 = vpack.c.b16 %v170, %v169
  %v180 = vpack.c.b16 %v172, %v171
  %v182 = vunpack.c.l.b16 %v28
  %v183 = vunpack.c.h.b16 %v28
  %v184 = vpack.c.b16 %v182, %v182
  %v185 = vpack.c.b16 %v183, %v183
  %vm186 = vcmask 56320
  %v188 = vsel %vm186, %v173, 0
  %v191 = vsel %vm186, %v174, 0
  %v194 = vsel %vm186, %v175, 0
  %v197 = vsel %vm186, %v176, 0
  %v200 = vsel %vm186, %v177, 0
  %v203 = vsel %vm186, %v178, 0
  %v206 = vsel %vm186, %v179, 0
  %v209 = vsel %vm186, %v180, 0
  %vm211 = vcmask 1042432
  %vm212 = vcmask 1043456
  %v213 = vsel %vm211, 4294967295, 65535
  %v214 = vsel %vm212, %v213, 0
  %v216 = vand.u32 %v184, %v214
  %v219 = vand.u32 %v185, %v214
  %221 = vmatprep.subr.bf16.mxu0 %v219
  %222 = vmatpush1.bf16.msra.mxu0 %v216
  %223 = vmatprep.subr.bf16.mxu0 0
  %224 = vmatpush1.bf16.msra.mxu0 0
  %225 = vmatprep.subr.bf16.mxu0 0
  %226 = vmatpush1.bf16.msra.mxu0 0
  %227 = vmatprep.subr.bf16.mxu0 0
  %228 = vmatpush1.bf16.msra.mxu0 0
  %229 = vmatprep.subr.bf16.mxu0 0
  %230 = vmatpush1.bf16.msra.mxu0 0
  %231 = vmatprep.subr.bf16.mxu0 0
  %232 = vmatpush1.bf16.msra.mxu0 0
  %233 = vmatprep.subr.bf16.mxu0 0
  %234 = vmatpush1.bf16.msra.mxu0 0
  %235 = vmatprep.subr.bf16.mxu0 0
  %236 = vmatpush1.bf16.msra.mxu0 0
  %237 = vmatprep.subr.bf16.mxu0 0
  %238 = vmatpush1.bf16.msra.mxu0 0
  %239 = vmatprep.subr.bf16.mxu0 0
  %240 = vmatpush1.bf16.msra.mxu0 0
  %241 = vmatprep.subr.bf16.mxu0 0
  %242 = vmatpush1.bf16.msra.mxu0 0
  %243 = vmatprep.subr.bf16.mxu0 0
  %244 = vmatpush1.bf16.msra.mxu0 0
  %245 = vmatprep.subr.bf16.mxu0 0
  %246 = vmatpush1.bf16.msra.mxu0 0
  %247 = vmatprep.subr.bf16.mxu0 0
  %248 = vmatpush1.bf16.msra.mxu0 0
  %249 = vmatprep.subr.bf16.mxu0 0
  %250 = vmatpush1.bf16.msra.mxu0 0
  %251 = vmatprep.subr.bf16.mxu0 0
  %252 = vmatpush1.bf16.msra.mxu0 0
  %253 = vmatprep.mubr.bf16.mxu0 0
  %254 = vmatmul.mubr.bf16.gmra.mrb[0].mxu0 %v188
  %v255 = vpop.f32.mrb[0].mxu0
  %v256 = vadd.f32 %v64, %v255
  %v257 = vpop.f32.mrb[0].mxu0
  %v258 = vadd.f32 %v64, %v257
  %v259 = vpop.f32.mrb[0].mxu0
  %v260 = vadd.f32 %v69, %v259
  %v261 = vpop.f32.mrb[0].mxu0
  %v262 = vadd.f32 %v69, %v261
  %263 = vmatprep.mubr.bf16.mxu0 0
  %264 = vmatmul.mubr.bf16.gmra.mrb[0].mxu0 %v191
  %v265 = vpop.f32.mrb[0].mxu0
  %v266 = vadd.f32 %v74, %v265
  %v267 = vpop.f32.mrb[0].mxu0
  %v268 = vadd.f32 %v74, %v267
  %v269 = vpop.f32.mrb[0].mxu0
  %v270 = vadd.f32 %v79, %v269
  %v271 = vpop.f32.mrb[0].mxu0
  %v272 = vadd.f32 %v79, %v271
  %273 = vmatprep.mubr.bf16.mxu0 0
  %274 = vmatmul.mubr.bf16.gmra.mrb[0].mxu0 %v194
  %v275 = vpop.f32.mrb[0].mxu0
  %v276 = vadd.f32 %v84, %v275
  %v277 = vpop.f32.mrb[0].mxu0
  %v278 = vadd.f32 %v84, %v277
  %v279 = vpop.f32.mrb[0].mxu0
  %v280 = vadd.f32 %v89, %v279
  %v281 = vpop.f32.mrb[0].mxu0
  %v282 = vadd.f32 %v89, %v281
  %283 = vmatprep.mubr.bf16.mxu0 0
  %284 = vmatmul.mubr.bf16.gmra.mrb[0].mxu0 %v197
  %v285 = vpop.f32.mrb[0].mxu0
  %v286 = vadd.f32 %v94, %v285
  %v287 = vpop.f32.mrb[0].mxu0
  %v288 = vadd.f32 %v94, %v287
  %v289 = vpop.f32.mrb[0].mxu0
  %v290 = vadd.f32 %v99, %v289
  %v291 = vpop.f32.mrb[0].mxu0
  %v292 = vadd.f32 %v99, %v291
  %293 = vmatprep.mubr.bf16.mxu0 0
  %294 = vmatmul.mubr.bf16.gmra.mrb[0].mxu0 %v200
  %v295 = vpop.f32.mrb[0].mxu0
  %v296 = vadd.f32 %v104, %v295
  %v297 = vpop.f32.mrb[0].mxu0
  %v298 = vadd.f32 %v104, %v297
  %v299 = vpop.f32.mrb[0].mxu0
  %v300 = vadd.f32 %v109, %v299
  %v301 = vpop.f32.mrb[0].mxu0
  %v302 = vadd.f32 %v109, %v301
  %303 = vmatprep.mubr.bf16.mxu0 0
  %304 = vmatmul.mubr.bf16.gmra.mrb[0].mxu0 %v203
  %v305 = vpop.f32.mrb[0].mxu0
  %v306 = vadd.f32 %v114, %v305
  %v307 = vpop.f32.mrb[0].mxu0
  %v308 = vadd.f32 %v114, %v307
  %v309 = vpop.f32.mrb[0].mxu0
  %v310 = vadd.f32 %v119, %v309
  %v311 = vpop.f32.mrb[0].mxu0
  %v312 = vadd.f32 %v119, %v311
  %313 = vmatprep.mubr.bf16.mxu0 0
  %314 = vmatmul.mubr.bf16.gmra.mrb[0].mxu0 %v206
  %v315 = vpop.f32.mrb[0].mxu0
  %v316 = vadd.f32 %v124, %v315
  %v317 = vpop.f32.mrb[0].mxu0
  %v318 = vadd.f32 %v124, %v317
  %v319 = vpop.f32.mrb[0].mxu0
  %v320 = vadd.f32 %v129, %v319
  %v321 = vpop.f32.mrb[0].mxu0
  %v322 = vadd.f32 %v129, %v321
  %323 = vmatprep.mubr.bf16.mxu0 0
  %324 = vmatmul.mubr.bf16.gmra.mrb[0].mxu0 %v209
  %v325 = vpop.f32.mrb[0].mxu0
  %v326 = vadd.f32 %v134, %v325
  %v327 = vpop.f32.mrb[0].mxu0
  %v328 = vadd.f32 %v134, %v327
  %v329 = vpop.f32.mrb[0].mxu0
  %v330 = vadd.f32 %v139, %v329
  %v331 = vpop.f32.mrb[0].mxu0
  %v332 = vadd.f32 %v139, %v331
  %333 = vdwg.mxu0
  %vm334 = vcmp.ge.f32.partialorder %v256, 0.0
  %vm335 = vcmp.ge.f32.partialorder %v258, 0.0
  %vm336 = vcmp.ge.f32.partialorder %v260, 0.0
  %vm337 = vcmp.ge.f32.partialorder %v262, 0.0
  %vm338 = vcmp.ge.f32.partialorder %v266, 0.0
  %vm339 = vcmp.ge.f32.partialorder %v268, 0.0
  %vm340 = vcmp.ge.f32.partialorder %v270, 0.0
  %vm341 = vcmp.ge.f32.partialorder %v272, 0.0
  %vm342 = vcmp.ge.f32.partialorder %v276, 0.0
  %vm343 = vcmp.ge.f32.partialorder %v278, 0.0
  %vm344 = vcmp.ge.f32.partialorder %v280, 0.0
  %vm345 = vcmp.ge.f32.partialorder %v282, 0.0
  %vm346 = vcmp.ge.f32.partialorder %v286, 0.0
  %vm347 = vcmp.ge.f32.partialorder %v288, 0.0
  %vm348 = vcmp.ge.f32.partialorder %v290, 0.0
  %vm349 = vcmp.ge.f32.partialorder %v292, 0.0
  %vm350 = vcmp.ge.f32.partialorder %v296, 0.0
  %vm351 = vcmp.ge.f32.partialorder %v298, 0.0
  %vm352 = vcmp.ge.f32.partialorder %v300, 0.0
  %vm353 = vcmp.ge.f32.partialorder %v302, 0.0
  %vm354 = vcmp.ge.f32.partialorder %v306, 0.0
  %vm355 = vcmp.ge.f32.partialorder %v308, 0.0
  %vm356 = vcmp.ge.f32.partialorder %v310, 0.0
  %vm357 = vcmp.ge.f32.partialorder %v312, 0.0
  %vm358 = vcmp.ge.f32.partialorder %v316, 0.0
  %vm359 = vcmp.ge.f32.partialorder %v318, 0.0
  %vm360 = vcmp.ge.f32.partialorder %v320, 0.0
  %vm361 = vcmp.ge.f32.partialorder %v322, 0.0
  %vm362 = vcmp.ge.f32.partialorder %v326, 0.0
  %vm363 = vcmp.ge.f32.partialorder %v328, 0.0
  %vm364 = vcmp.ge.f32.partialorder %v330, 0.0
  %vm365 = vcmp.ge.f32.partialorder %v332, 0.0
  %v366 = vmul.f32 %v256, 0.2
  %v367 = vmul.f32 %v258, 0.2
  %v368 = vmul.f32 %v260, 0.2
  %v369 = vmul.f32 %v262, 0.2
  %v370 = vmul.f32 %v266, 0.2
  %v371 = vmul.f32 %v268, 0.2
  %v372 = vmul.f32 %v270, 0.2
  %v373 = vmul.f32 %v272, 0.2
  %v374 = vmul.f32 %v276, 0.2
  %v375 = vmul.f32 %v278, 0.2
  %v376 = vmul.f32 %v280, 0.2
  %v377 = vmul.f32 %v282, 0.2
  %v378 = vmul.f32 %v286, 0.2
  %v379 = vmul.f32 %v288, 0.2
  %v380 = vmul.f32 %v290, 0.2
  %v381 = vmul.f32 %v292, 0.2
  %v382 = vmul.f32 %v296, 0.2
  %v383 = vmul.f32 %v298, 0.2
  %v384 = vmul.f32 %v300, 0.2
  %v385 = vmul.f32 %v302, 0.2
  %v386 = vmul.f32 %v306, 0.2
  %v387 = vmul.f32 %v308, 0.2
  %v388 = vmul.f32 %v310, 0.2
  %v389 = vmul.f32 %v312, 0.2
  %v390 = vmul.f32 %v316, 0.2
  %v391 = vmul.f32 %v318, 0.2
  %v392 = vmul.f32 %v320, 0.2
  %v393 = vmul.f32 %v322, 0.2
  %v394 = vmul.f32 %v326, 0.2
  %v395 = vmul.f32 %v328, 0.2
  %v396 = vmul.f32 %v330, 0.2
  %v397 = vmul.f32 %v332, 0.2
  %v398 = vsel %vm334, %v256, %v366
  %v399 = vsel %vm335, %v258, %v367
  %v400 = vsel %vm336, %v260, %v368
  %v401 = vsel %vm337, %v262, %v369
  %v402 = vsel %vm338, %v266, %v370
  %v403 = vsel %vm339, %v268, %v371
  %v404 = vsel %vm340, %v270, %v372
  %v405 = vsel %vm341, %v272, %v373
  %v406 = vsel %vm342, %v276, %v374
  %v407 = vsel %vm343, %v278, %v375
  %v408 = vsel %vm344, %v280, %v376
  %v409 = vsel %vm345, %v282, %v377
  %v410 = vsel %vm346, %v286, %v378
  %v411 = vsel %vm347, %v288, %v379
  %v412 = vsel %vm348, %v290, %v380
  %v413 = vsel %vm349, %v292, %v381
  %v414 = vsel %vm350, %v296, %v382
  %v415 = vsel %vm351, %v298, %v383
  %v416 = vsel %vm352, %v300, %v384
  %v417 = vsel %vm353, %v302, %v385
  %v418 = vsel %vm354, %v306, %v386
  %v419 = vsel %vm355, %v308, %v387
  %v420 = vsel %vm356, %v310, %v388
  %v421 = vsel %vm357, %v312, %v389
  %v422 = vsel %vm358, %v316, %v390
  %v423 = vsel %vm359, %v318, %v391
  %v424 = vsel %vm360, %v320, %v392
  %v425 = vsel %vm361, %v322, %v393
  %v426 = vsel %vm362, %v326, %v394
  %v427 = vsel %vm363, %v328, %v395
  %v428 = vsel %vm364, %v330, %v396
  %v429 = vsel %vm365, %v332, %v397
  %v430 = vld [vmem:[%s3] sm:$0xf]
  %v431 = vld [vmem:[%s3 + $0x4] sm:$0xf]
  %v432 = vld [vmem:[%s3 + $0x8] sm:$0xf]
  %v433 = vld [vmem:[%s3 + $0xc] sm:$0xf]
  %v434 = vld [vmem:[%s3 + $0x10] sm:$0xf]
  %v435 = vld [vmem:[%s3 + $0x14] sm:$0xf]
  %v436 = vld [vmem:[%s3 + $0x18] sm:$0xf]
  %v437 = vld [vmem:[%s3 + $0x1c] sm:$0xf]
  %v438 = vld [vmem:[%s3 + $0x20] sm:$0xf]
  %v439 = vld [vmem:[%s3 + $0x24] sm:$0xf]
  %v440 = vld [vmem:[%s3 + $0x28] sm:$0xf]
  %v441 = vld [vmem:[%s3 + $0x2c] sm:$0xf]
  %v442 = vld [vmem:[%s3 + $0x30] sm:$0xf]
  %v443 = vld [vmem:[%s3 + $0x34] sm:$0xf]
  %v444 = vld [vmem:[%s3 + $0x38] sm:$0xf]
  %v445 = vld [vmem:[%s3 + $0x3c] sm:$0xf]
  %v446 = vpack.c.bf16 %v400, %v398
  %v447 = vpack.c.bf16 %v401, %v399
  %v448 = vpack.c.bf16 %v404, %v402
  %v449 = vpack.c.bf16 %v405, %v403
  %v450 = vpack.c.bf16 %v408, %v406
  %v451 = vpack.c.bf16 %v409, %v407
  %v452 = vpack.c.bf16 %v412, %v410
  %v453 = vpack.c.bf16 %v413, %v411
  %v454 = vpack.c.bf16 %v416, %v414
  %v455 = vpack.c.bf16 %v417, %v415
  %v456 = vpack.c.bf16 %v420, %v418
  %v457 = vpack.c.bf16 %v421, %v419
  %v458 = vpack.c.bf16 %v424, %v422
  %v459 = vpack.c.bf16 %v425, %v423
  %v460 = vpack.c.bf16 %v428, %v426
  %v461 = vpack.c.bf16 %v429, %v427
  %v462 = vld [vmem:[%s4] sm:$0xff]
  %v463 = vld [vmem:[%s4 + $0x8] sm:$0xff]
  %v464 = vld [vmem:[%s4 + $0x10] sm:$0xff]
  %v465 = vld [vmem:[%s4 + $0x18] sm:$0xff]
  %v466 = vld [vmem:[%s4 + $0x20] sm:$0xff]
  %v467 = vld [vmem:[%s4 + $0x28] sm:$0xff]
  %v468 = vld [vmem:[%s4 + $0x30] sm:$0xff]
  %v469 = vld [vmem:[%s4 + $0x38] sm:$0xff]
  %v470 = vld [vmem:[%s4 + $0x40] sm:$0xff]
  %v471 = vld [vmem:[%s4 + $0x48] sm:$0xff]
  %v472 = vld [vmem:[%s4 + $0x50] sm:$0xff]
  %v473 = vld [vmem:[%s4 + $0x58] sm:$0xff]
  %v474 = vld [vmem:[%s4 + $0x60] sm:$0xff]
  %v475 = vld [vmem:[%s4 + $0x68] sm:$0xff]
  %v476 = vld [vmem:[%s4 + $0x70] sm:$0xff]
  %v477 = vld [vmem:[%s4 + $0x78] sm:$0xff]
  %479 = vset.pattern.permute.xlu0 0
  %480 = vperm.xlu0 %479, %v462
  %v481 = vpop.permute.xlu0 %480
  %484 = vset.pattern.permute.xlu0 0
  %485 = vperm.xlu0 %484, %v463
  %v486 = vpop.permute.xlu0 %485
  %489 = vset.pattern.permute.xlu0 0
  %490 = vperm.xlu0 %489, %v464
  %v491 = vpop.permute.xlu0 %490
  %494 = vset.pattern.permute.xlu0 0
  %495 = vperm.xlu0 %494, %v465
  %v496 = vpop.permute.xlu0 %495
  %499 = vset.pattern.permute.xlu0 0
  %500 = vperm.xlu0 %499, %v466
  %v501 = vpop.permute.xlu0 %500
  %504 = vset.pattern.permute.xlu0 0
  %505 = vperm.xlu0 %504, %v467
  %v506 = vpop.permute.xlu0 %505
  %509 = vset.pattern.permute.xlu0 0
  %510 = vperm.xlu0 %509, %v468
  %v511 = vpop.permute.xlu0 %510
  %514 = vset.pattern.permute.xlu0 0
  %515 = vperm.xlu0 %514, %v469
  %v516 = vpop.permute.xlu0 %515
  %519 = vset.pattern.permute.xlu0 0
  %520 = vperm.xlu0 %519, %v470
  %v521 = vpop.permute.xlu0 %520
  %524 = vset.pattern.permute.xlu0 0
  %525 = vperm.xlu0 %524, %v471
  %v526 = vpop.permute.xlu0 %525
  %529 = vset.pattern.permute.xlu0 0
  %530 = vperm.xlu0 %529, %v472
  %v531 = vpop.permute.xlu0 %530
  %534 = vset.pattern.permute.xlu0 0
  %535 = vperm.xlu0 %534, %v473
  %v536 = vpop.permute.xlu0 %535
  %539 = vset.pattern.permute.xlu0 0
  %540 = vperm.xlu0 %539, %v474
  %v541 = vpop.permute.xlu0 %540
  %544 = vset.pattern.permute.xlu0 0
  %545 = vperm.xlu0 %544, %v475
  %v546 = vpop.permute.xlu0 %545
  %549 = vset.pattern.permute.xlu0 0
  %550 = vperm.xlu0 %549, %v476
  %v551 = vpop.permute.xlu0 %550
  %554 = vset.pattern.permute.xlu0 0
  %555 = vperm.xlu0 %554, %v477
  %v556 = vpop.permute.xlu0 %555
  %v574 = vunpack.c.l.b16 %v430
  %v575 = vunpack.c.l.b16 %v431
  %v576 = vunpack.c.l.b16 %v432
  %v577 = vunpack.c.l.b16 %v433
  %v578 = vunpack.c.l.b16 %v434
  %v579 = vunpack.c.l.b16 %v435
  %v580 = vunpack.c.l.b16 %v436
  %v581 = vunpack.c.l.b16 %v437
  %v582 = vunpack.c.l.b16 %v438
  %v583 = vunpack.c.l.b16 %v439
  %v584 = vunpack.c.l.b16 %v440
  %v585 = vunpack.c.l.b16 %v441
  %v586 = vunpack.c.l.b16 %v442
  %v587 = vunpack.c.l.b16 %v443
  %v588 = vunpack.c.l.b16 %v444
  %v589 = vunpack.c.l.b16 %v445
  %v590 = vpack.c.b16 %v575, %v574
  %v591 = vpack.c.b16 %v577, %v576
  %v592 = vpack.c.b16 %v579, %v578
  %v593 = vpack.c.b16 %v581, %v580
  %v594 = vpack.c.b16 %v583, %v582
  %v595 = vpack.c.b16 %v585, %v584
  %v596 = vpack.c.b16 %v587, %v586
  %v597 = vpack.c.b16 %v589, %v588
  %606 = vmatprep.subr.bf16.mxu0 %v447
  %607 = vmatpush1.bf16.msra.mxu0 %v446
  %608 = vmatprep.subr.bf16.mxu0 %v449
  %609 = vmatpush1.bf16.msra.mxu0 %v448
  %610 = vmatprep.subr.bf16.mxu0 %v451
  %611 = vmatpush1.bf16.msra.mxu0 %v450
  %612 = vmatprep.subr.bf16.mxu0 %v453
  %613 = vmatpush1.bf16.msra.mxu0 %v452
  %614 = vmatprep.subr.bf16.mxu0 %v455
  %615 = vmatpush1.bf16.msra.mxu0 %v454
  %616 = vmatprep.subr.bf16.mxu0 %v457
  %617 = vmatpush1.bf16.msra.mxu0 %v456
  %618 = vmatprep.subr.bf16.mxu0 %v459
  %619 = vmatpush1.bf16.msra.mxu0 %v458
  %620 = vmatprep.subr.bf16.mxu0 %v461
  %621 = vmatpush1.bf16.msra.mxu0 %v460
  %622 = vmatprep.subr.bf16.mxu0 0
  %623 = vmatpush1.bf16.msra.mxu0 0
  %624 = vmatprep.subr.bf16.mxu0 0
  %625 = vmatpush1.bf16.msra.mxu0 0
  %626 = vmatprep.subr.bf16.mxu0 0
  %627 = vmatpush1.bf16.msra.mxu0 0
  %628 = vmatprep.subr.bf16.mxu0 0
  %629 = vmatpush1.bf16.msra.mxu0 0
  %630 = vmatprep.subr.bf16.mxu0 0
  %631 = vmatpush1.bf16.msra.mxu0 0
  %632 = vmatprep.subr.bf16.mxu0 0
  %633 = vmatpush1.bf16.msra.mxu0 0
  %634 = vmatprep.subr.bf16.mxu0 0
  %635 = vmatpush1.bf16.msra.mxu0 0
  %636 = vmatprep.subr.bf16.mxu0 0
  %637 = vmatpush1.bf16.msra.mxu0 0
  %638 = vmatprep.mubr.bf16.mxu0 0
  %639 = vmatmul.mubr.bf16.gmra.mrb[0].mxu0 %v590
  %v640 = vpop.f32.mrb[0].mxu0
  %v641 = vadd.f32 %v481, %v640
  %v642 = vpop.f32.mrb[0].mxu0
  %v643 = vadd.f32 %v481, %v642
  %v644 = vpop.f32.mrb[0].mxu0
  %v645 = vadd.f32 %v486, %v644
  %v646 = vpop.f32.mrb[0].mxu0
  %v647 = vadd.f32 %v486, %v646
  %648 = vmatprep.mubr.bf16.mxu0 0
  %649 = vmatmul.mubr.bf16.gmra.mrb[0].mxu0 %v591
  %v650 = vpop.f32.mrb[0].mxu0
  %v651 = vadd.f32 %v491, %v650
  %v652 = vpop.f32.mrb[0].mxu0
  %v653 = vadd.f32 %v491, %v652
  %v654 = vpop.f32.mrb[0].mxu0
  %v655 = vadd.f32 %v496, %v654
  %v656 = vpop.f32.mrb[0].mxu0
  %v657 = vadd.f32 %v496, %v656
  %658 = vmatprep.mubr.bf16.mxu0 0
  %659 = vmatmul.mubr.bf16.gmra.mrb[0].mxu0 %v592
  %v660 = vpop.f32.mrb[0].mxu0
  %v661 = vadd.f32 %v501, %v660
  %v662 = vpop.f32.mrb[0].mxu0
  %v663 = vadd.f32 %v501, %v662
  %v664 = vpop.f32.mrb[0].mxu0
  %v665 = vadd.f32 %v506, %v664
  %v666 = vpop.f32.mrb[0].mxu0
  %v667 = vadd.f32 %v506, %v666
  %668 = vmatprep.mubr.bf16.mxu0 0
  %669 = vmatmul.mubr.bf16.gmra.mrb[0].mxu0 %v593
  %v670 = vpop.f32.mrb[0].mxu0
  %v671 = vadd.f32 %v511, %v670
  %v672 = vpop.f32.mrb[0].mxu0
  %v673 = vadd.f32 %v511, %v672
  %v674 = vpop.f32.mrb[0].mxu0
  %v675 = vadd.f32 %v516, %v674
  %v676 = vpop.f32.mrb[0].mxu0
  %v677 = vadd.f32 %v516, %v676
  %678 = vmatprep.mubr.bf16.mxu0 0
  %679 = vmatmul.mubr.bf16.gmra.mrb[0].mxu0 %v594
  %v680 = vpop.f32.mrb[0].mxu0
  %v681 = vadd.f32 %v521, %v680
  %v682 = vpop.f32.mrb[0].mxu0
  %v683 = vadd.f32 %v521, %v682
  %v684 = vpop.f32.mrb[0].mxu0
  %v685 = vadd.f32 %v526, %v684
  %v686 = vpop.f32.mrb[0].mxu0
  %v687 = vadd.f32 %v526, %v686
  %688 = vmatprep.mubr.bf16.mxu0 0
  %689 = vmatmul.mubr.bf16.gmra.mrb[0].mxu0 %v595
  %v690 = vpop.f32.mrb[0].mxu0
  %v691 = vadd.f32 %v531, %v690
  %v692 = vpop.f32.mrb[0].mxu0
  %v693 = vadd.f32 %v531, %v692
  %v694 = vpop.f32.mrb[0].mxu0
  %v695 = vadd.f32 %v536, %v694
  %v696 = vpop.f32.mrb[0].mxu0
  %v697 = vadd.f32 %v536, %v696
  %698 = vmatprep.mubr.bf16.mxu0 0
  %699 = vmatmul.mubr.bf16.gmra.mrb[0].mxu0 %v596
  %v700 = vpop.f32.mrb[0].mxu0
  %v701 = vadd.f32 %v541, %v700
  %v702 = vpop.f32.mrb[0].mxu0
  %v703 = vadd.f32 %v541, %v702
  %v704 = vpop.f32.mrb[0].mxu0
  %v705 = vadd.f32 %v546, %v704
  %v706 = vpop.f32.mrb[0].mxu0
  %v707 = vadd.f32 %v546, %v706
  %708 = vmatprep.mubr.bf16.mxu0 0
  %709 = vmatmul.mubr.bf16.gmra.mrb[0].mxu0 %v597
  %v710 = vpop.f32.mrb[0].mxu0
  %v711 = vadd.f32 %v551, %v710
  %v712 = vpop.f32.mrb[0].mxu0
  %v713 = vadd.f32 %v551, %v712
  %v714 = vpop.f32.mrb[0].mxu0
  %v715 = vadd.f32 %v556, %v714
  %v716 = vpop.f32.mrb[0].mxu0
  %v717 = vadd.f32 %v556, %v716
  %718 = vdwg.mxu0
  %vm719 = vcmp.ge.f32.partialorder %v641, 0.0
  %vm720 = vcmp.ge.f32.partialorder %v643, 0.0
  %vm721 = vcmp.ge.f32.partialorder %v645, 0.0
  %vm722 = vcmp.ge.f32.partialorder %v647, 0.0
  %vm723 = vcmp.ge.f32.partialorder %v651, 0.0
  %vm724 = vcmp.ge.f32.partialorder %v653, 0.0
  %vm725 = vcmp.ge.f32.partialorder %v655, 0.0
  %vm726 = vcmp.ge.f32.partialorder %v657, 0.0
  %vm727 = vcmp.ge.f32.partialorder %v661, 0.0
  %vm728 = vcmp.ge.f32.partialorder %v663, 0.0
  %vm729 = vcmp.ge.f32.partialorder %v665, 0.0
  %vm730 = vcmp.ge.f32.partialorder %v667, 0.0
  %vm731 = vcmp.ge.f32.partialorder %v671, 0.0
  %vm732 = vcmp.ge.f32.partialorder %v673, 0.0
  %vm733 = vcmp.ge.f32.partialorder %v675, 0.0
  %vm734 = vcmp.ge.f32.partialorder %v677, 0.0
  %vm735 = vcmp.ge.f32.partialorder %v681, 0.0
  %vm736 = vcmp.ge.f32.partialorder %v683, 0.0
  %vm737 = vcmp.ge.f32.partialorder %v685, 0.0
  %vm738 = vcmp.ge.f32.partialorder %v687, 0.0
  %vm739 = vcmp.ge.f32.partialorder %v691, 0.0
  %vm740 = vcmp.ge.f32.partialorder %v693, 0.0
  %vm741 = vcmp.ge.f32.partialorder %v695, 0.0
  %vm742 = vcmp.ge.f32.partialorder %v697, 0.0
  %vm743 = vcmp.ge.f32.partialorder %v701, 0.0
  %vm744 = vcmp.ge.f32.partialorder %v703, 0.0
  %vm745 = vcmp.ge.f32.partialorder %v705, 0.0
  %vm746 = vcmp.ge.f32.partialorder %v707, 0.0
  %vm747 = vcmp.ge.f32.partialorder %v711, 0.0
  %vm748 = vcmp.ge.f32.partialorder %v713, 0.0
  %vm749 = vcmp.ge.f32.partialorder %v715, 0.0
  %vm750 = vcmp.ge.f32.partialorder %v717, 0.0
  %v751 = vmul.f32 %v641, 0.2
  %v752 = vmul.f32 %v643, 0.2
  %v753 = vmul.f32 %v645, 0.2
  %v754 = vmul.f32 %v647, 0.2
  %v755 = vmul.f32 %v651, 0.2
  %v756 = vmul.f32 %v653, 0.2
  %v757 = vmul.f32 %v655, 0.2
  %v758 = vmul.f32 %v657, 0.2
  %v759 = vmul.f32 %v661, 0.2
  %v760 = vmul.f32 %v663, 0.2
  %v761 = vmul.f32 %v665, 0.2
  %v762 = vmul.f32 %v667, 0.2
  %v763 = vmul.f32 %v671, 0.2
  %v764 = vmul.f32 %v673, 0.2
  %v765 = vmul.f32 %v675, 0.2
  %v766 = vmul.f32 %v677, 0.2
  %v767 = vmul.f32 %v681, 0.2
  %v768 = vmul.f32 %v683, 0.2
  %v769 = vmul.f32 %v685, 0.2
  %v770 = vmul.f32 %v687, 0.2
  %v771 = vmul.f32 %v691, 0.2
  %v772 = vmul.f32 %v693, 0.2
  %v773 = vmul.f32 %v695, 0.2
  %v774 = vmul.f32 %v697, 0.2
  %v775 = vmul.f32 %v701, 0.2
  %v776 = vmul.f32 %v703, 0.2
  %v777 = vmul.f32 %v705, 0.2
  %v778 = vmul.f32 %v707, 0.2
  %v779 = vmul.f32 %v711, 0.2
  %v780 = vmul.f32 %v713, 0.2
  %v781 = vmul.f32 %v715, 0.2
  %v782 = vmul.f32 %v717, 0.2
  %v783 = vsel %vm719, %v641, %v751
  %v784 = vsel %vm720, %v643, %v752
  %v785 = vsel %vm721, %v645, %v753
  %v786 = vsel %vm722, %v647, %v754
  %v787 = vsel %vm723, %v651, %v755
  %v788 = vsel %vm724, %v653, %v756
  %v789 = vsel %vm725, %v655, %v757
  %v790 = vsel %vm726, %v657, %v758
  %v791 = vsel %vm727, %v661, %v759
  %v792 = vsel %vm728, %v663, %v760
  %v793 = vsel %vm729, %v665, %v761
  %v794 = vsel %vm730, %v667, %v762
  %v795 = vsel %vm731, %v671, %v763
  %v796 = vsel %vm732, %v673, %v764
  %v797 = vsel %vm733, %v675, %v765
  %v798 = vsel %vm734, %v677, %v766
  %v799 = vsel %vm735, %v681, %v767
  %v800 = vsel %vm736, %v683, %v768
  %v801 = vsel %vm737, %v685, %v769
  %v802 = vsel %vm738, %v687, %v770
  %v803 = vsel %vm739, %v691, %v771
  %v804 = vsel %vm740, %v693, %v772
  %v805 = vsel %vm741, %v695, %v773
  %v806 = vsel %vm742, %v697, %v774
  %v807 = vsel %vm743, %v701, %v775
  %v808 = vsel %vm744, %v703, %v776
  %v809 = vsel %vm745, %v705, %v777
  %v810 = vsel %vm746, %v707, %v778
  %v811 = vsel %vm747, %v711, %v779
  %v812 = vsel %vm748, %v713, %v780
  %v813 = vsel %vm749, %v715, %v781
  %v814 = vsel %vm750, %v717, %v782
  %v815 = vld [vmem:[%s5] sm:$0xff]
  %v816 = vld [vmem:[%s5 + $0x8] sm:$0xff]
  %v817 = vld [vmem:[%s5 + $0x10] sm:$0xff]
  %v818 = vld [vmem:[%s5 + $0x18] sm:$0xff]
  %v819 = vld [vmem:[%s5 + $0x20] sm:$0xff]
  %v820 = vld [vmem:[%s5 + $0x28] sm:$0xff]
  %v821 = vld [vmem:[%s5 + $0x30] sm:$0xff]
  %v822 = vld [vmem:[%s5 + $0x38] sm:$0xff]
  %v823 = vld [vmem:[%s5 + $0x40] sm:$0xff]
  %v824 = vld [vmem:[%s5 + $0x48] sm:$0xff]
  %v825 = vld [vmem:[%s5 + $0x50] sm:$0xff]
  %v826 = vld [vmem:[%s5 + $0x58] sm:$0xff]
  %v827 = vld [vmem:[%s5 + $0x60] sm:$0xff]
  %v828 = vld [vmem:[%s5 + $0x68] sm:$0xff]
  %v829 = vld [vmem:[%s5 + $0x70] sm:$0xff]
  %v830 = vld [vmem:[%s5 + $0x78] sm:$0xff]
  %832 = vset.pattern.permute.xlu0 0
  %833 = vperm.xlu0 %832, %v815
  %v834 = vpop.permute.xlu0 %833
  %837 = vset.pattern.permute.xlu0 0
  %838 = vperm.xlu0 %837, %v816
  %v839 = vpop.permute.xlu0 %838
  %842 = vset.pattern.permute.xlu0 0
  %843 = vperm.xlu0 %842, %v817
  %v844 = vpop.permute.xlu0 %843
  %847 = vset.pattern.permute.xlu0 0
  %848 = vperm.xlu0 %847, %v818
  %v849 = vpop.permute.xlu0 %848
  %852 = vset.pattern.permute.xlu0 0
  %853 = vperm.xlu0 %852, %v819
  %v854 = vpop.permute.xlu0 %853
  %857 = vset.pattern.permute.xlu0 0
  %858 = vperm.xlu0 %857, %v820
  %v859 = vpop.permute.xlu0 %858
  %862 = vset.pattern.permute.xlu0 0
  %863 = vperm.xlu0 %862, %v821
  %v864 = vpop.permute.xlu0 %863
  %867 = vset.pattern.permute.xlu0 0
  %868 = vperm.xlu0 %867, %v822
  %v869 = vpop.permute.xlu0 %868
  %872 = vset.pattern.permute.xlu0 0
  %873 = vperm.xlu0 %872, %v823
  %v874 = vpop.permute.xlu0 %873
  %877 = vset.pattern.permute.xlu0 0
  %878 = vperm.xlu0 %877, %v824
  %v879 = vpop.permute.xlu0 %878
  %882 = vset.pattern.permute.xlu0 0
  %883 = vperm.xlu0 %882, %v825
  %v884 = vpop.permute.xlu0 %883
  %887 = vset.pattern.permute.xlu0 0
  %888 = vperm.xlu0 %887, %v826
  %v889 = vpop.permute.xlu0 %888
  %892 = vset.pattern.permute.xlu0 0
  %893 = vperm.xlu0 %892, %v827
  %v894 = vpop.permute.xlu0 %893
  %897 = vset.pattern.permute.xlu0 0
  %898 = vperm.xlu0 %897, %v828
  %v899 = vpop.permute.xlu0 %898
  %902 = vset.pattern.permute.xlu0 0
  %903 = vperm.xlu0 %902, %v829
  %v904 = vpop.permute.xlu0 %903
  %907 = vset.pattern.permute.xlu0 0
  %908 = vperm.xlu0 %907, %v830
  %v909 = vpop.permute.xlu0 %908
  %v911 = vmul.f32 %v783, %v834
  %v912 = vmul.f32 %v784, %v834
  %v913 = vmul.f32 %v785, %v839
  %v914 = vmul.f32 %v786, %v839
  %v915 = vmul.f32 %v787, %v844
  %v916 = vmul.f32 %v788, %v844
  %v917 = vmul.f32 %v789, %v849
  %v918 = vmul.f32 %v790, %v849
  %v919 = vmul.f32 %v791, %v854
  %v920 = vmul.f32 %v792, %v854
  %v921 = vmul.f32 %v793, %v859
  %v922 = vmul.f32 %v794, %v859
  %v923 = vmul.f32 %v795, %v864
  %v924 = vmul.f32 %v796, %v864
  %v925 = vmul.f32 %v797, %v869
  %v926 = vmul.f32 %v798, %v869
  %v927 = vmul.f32 %v799, %v874
  %v928 = vmul.f32 %v800, %v874
  %v929 = vmul.f32 %v801, %v879
  %v930 = vmul.f32 %v802, %v879
  %v931 = vmul.f32 %v803, %v884
  %v932 = vmul.f32 %v804, %v884
  %v933 = vmul.f32 %v805, %v889
  %v934 = vmul.f32 %v806, %v889
  %v935 = vmul.f32 %v807, %v894
  %v936 = vmul.f32 %v808, %v894
  %v937 = vmul.f32 %v809, %v899
  %v938 = vmul.f32 %v810, %v899
  %v939 = vmul.f32 %v811, %v904
  %v940 = vmul.f32 %v812, %v904
  %v941 = vmul.f32 %v813, %v909
  %v942 = vmul.f32 %v814, %v909
  %v943 = vadd.f32 %v911, %v913
  %v944 = vadd.f32 %v943, %v915
  %v945 = vadd.f32 %v944, %v917
  %v946 = vadd.f32 %v945, %v919
  %v947 = vadd.f32 %v946, %v921
  %v948 = vadd.f32 %v947, %v923
  %v949 = vadd.f32 %v948, %v925
  %v950 = vadd.f32 %v949, %v927
  %v951 = vadd.f32 %v950, %v929
  %v952 = vadd.f32 %v951, %v931
  %v953 = vadd.f32 %v952, %v933
  %v954 = vadd.f32 %v953, %v935
  %v955 = vadd.f32 %v954, %v937
  %v956 = vadd.f32 %v955, %v939
  %v957 = vadd.f32 %v956, %v941
  %v958 = vrot.slane %v957, 4
  %v959 = vadd.f32 %v957, %v958
  %v960 = vrot.slane %v959, 2
  %v961 = vadd.f32 %v959, %v960
  %v962 = vrot.slane %v961, 1
  %v963 = vadd.f32 %v961, %v962
  %v964 = vadd.f32 %v912, %v914
  %v965 = vadd.f32 %v964, %v916
  %v966 = vadd.f32 %v965, %v918
  %v967 = vadd.f32 %v966, %v920
  %v968 = vadd.f32 %v967, %v922
  %v969 = vadd.f32 %v968, %v924
  %v970 = vadd.f32 %v969, %v926
  %v971 = vadd.f32 %v970, %v928
  %v972 = vadd.f32 %v971, %v930
  %v973 = vadd.f32 %v972, %v932
  %v974 = vadd.f32 %v973, %v934
  %v975 = vadd.f32 %v974, %v936
  %v976 = vadd.f32 %v975, %v938
  %v977 = vadd.f32 %v976, %v940
  %v978 = vadd.f32 %v977, %v942
  %v979 = vrot.slane %v978, 4
  %v980 = vadd.f32 %v978, %v979
  %v981 = vrot.slane %v980, 2
  %v982 = vadd.f32 %v980, %v981
  %v983 = vrot.slane %v982, 1
  %v984 = vadd.f32 %v982, %v983
  %s985 = sld [smem:[#allocation2]]
  %v986 = vstv %s985
  %v987 = vadd.f32 %v963, %v986
  %v988 = vadd.f32 %v984, %v986
  %v989 = vsub.f32 0.0, %v987
  %v990 = vsub.f32 0.0, %v988
  %v991 = vmul.f32 %v989, 1.442695
  %v992 = vpow.pop %v991
  %v993 = vmul.f32 %v990, 1.442695
  %v994 = vpow.pop %v993
  %v995 = vadd.f32 %v992, 1.0
  %v996 = vadd.f32 %v994, 1.0
  %v997 = vrcp.pop %v995
  %v998 = vrcp.pop %v996
  %v1001 = vcombine.low %v997, %v998
  %v1003 = vunpack.c.l.s4 1966171168
  %v1004 = vunpack.c.0.s8 %v1003
  %v1005 = vlaneseq
  %v1006 = vshrl.u32 %v1005, 7
  %v1007 = vsub.s32 %v1004, %v1006
  %v1008 = vrot.slane %v1001, %v1007
  %v1010 = vunpack.c.l.s4 1966171168
  %v1011 = vunpack.c.0.s8 %v1010
  %v1012 = vlaneseq
  %v1013 = vshrl.u32 %v1012, 7
  %v1014 = vsub.s32 %v1011, %v1013
  %v1015 = vrot.slane %v1008, %v1014
  %v1017 = vlaneseq
  %vm1018 = vcmp.ge.s32.totalorder %v1017, 0
  %vm1019 = vcmp.lt.s32.totalorder %v1017, 256
  %vm1020 = vmand %vm1018, %vm1019
  %1021 = vst.msk [vmem:[%s7] sm:$0x3] %vm1020, %v1015
  // Predicated region
  $region30: #{discriminator_forward.1} parent=0 // pred_check
    _
  $region31: #{discriminator_forward.1} parent=0 // pred_check_branch
    %1023 = sbr.rel (0) target = $region33
  $region32: #{discriminator_forward.1} parent=0 // pred_region
    _
  $region33: #{discriminator_forward.1} parent=0 // pred_fallthru
    _
  // Predicated region
  $region34: #{discriminator_forward.1} parent=0 // pred_check
    _
  $region35: #{discriminator_forward.1} parent=0 // pred_check_branch
    %1025 = sbr.rel (0) target = $region37
  $region36: #{discriminator_forward.1} parent=0 // pred_region
    _
  $region37: #{discriminator_forward.1} parent=0 // pred_fallthru
    _

</llo_original>
